<compile_context>
chip_gen: v7x
topology: tpu7x:2x2x1
jax: 0.10.0
libtpu: 0.0.40
codegen_flags: <defaults>
</compile_context>

<pallas_src>
import jax
import jax.numpy as jnp
from jax.experimental import pallas as pl
from jax.experimental.pallas import tpu as pltpu


def _loss_kernel(p_ref, t_ref, out_ref):
    """Blocks:
      p_ref, t_ref : (1, C, S_TILE, 128)  raw predictions / prob. targets
      out_ref      : (1, 1, 4, 8, 128) f32, resident across the reduction axis.
                     slab 0: sum_c p*t, 1: sum_c p, 2: sum_c t, 3: per-pos CE.
    """
    s = pl.program_id(2)

    @pl.when(s == 0)
    def _init():
        out_ref[...] = jnp.zeros_like(out_ref)

    C = p_ref.shape[1]

    def fold(x):
        # (S_TILE, 128) -> (8, 128): slab-aligned reshape (no (8,128) tile
        # crossing) + leading-axis sum => plain VALU adds, no XLU.
        return jnp.sum(x.reshape(-1, 8, 128), axis=0)

    # ---- pass 1: channel max + running sums; one f32 channel slab live ----
    p0 = p_ref[0, 0].astype(jnp.float32)   # (S_TILE, 128)
    t0 = t_ref[0, 0].astype(jnp.float32)
    m = p0
    psum = p0
    tsum = t0
    prod = p0 * t0
    for c in range(1, C):
        pc = p_ref[0, c].astype(jnp.float32)
        tc = t_ref[0, c].astype(jnp.float32)
        m = jnp.maximum(m, pc)
        psum = psum + pc
        tsum = tsum + tc
        prod = prod + pc * tc

    # ---- pass 2: stable softmax denominator (re-read slabs from VMEM) ----
    sexp = jnp.exp(p_ref[0, 0].astype(jnp.float32) - m)
    for c in range(1, C):
        sexp = sexp + jnp.exp(p_ref[0, c].astype(jnp.float32) - m)
    lse = jnp.log(sexp) + m
    # -sum_c t*(p - lse) = lse*sum_c(t) - sum_c(t*p)
    ce = lse * tsum - prod

    # Dense, unmasked (8,128) accumulator updates into the resident out block.
    out_ref[0, 0, 0] += fold(prod)
    out_ref[0, 0, 1] += fold(psum)
    out_ref[0, 0, 2] += fold(tsum)
    out_ref[0, 0, 3] += fold(ce)


# f32 temporaries the kernel keeps live per (S_TILE, 128) row (upper bound).
_TMP_SLABS = 10


def _vmem_budget_bytes() -> int:
    """Generation-aware VMEM budget (leave headroom for Mosaic scratch)."""
    phys = 64 << 20  # conservative default: v7x per-TensorCore VMEM
    try:
        info = pltpu.get_tpu_info()
        cap = getattr(info, "vmem_capacity_bytes", None)
        if cap:
            phys = int(cap)
    except Exception:
        pass
    # ~45 MiB on v7x (64 MiB phys), ~90 MiB on v5e/v6e (128 MiB phys).
    return int(min(phys * 0.7, 100 << 20))


def _plan_tiles(hw: int, C: int, itemsize: int, vmem_budget: int):
    """Pick (num_par, s_tile, tiles_per_chunk, s_total[padded rows])."""
    s_full = -(-hw // 128)                       # rows of 128 positions (pre-pad)
    num_par = 2 if s_full >= 16 else 1           # split HW reduction for v7x megacore

    row_in_bytes = C * 128 * itemsize            # one row of one input block
    # Byte-targeted tile: ~2 MiB per input block so DMA time >> per-step overhead.
    s_target = max(8, ((2 << 20) // row_in_bytes) // 8 * 8)
    # VMEM per extra row: 2 inputs x 2 pipeline buffers + f32 temporaries.
    per_row = 2 * 2 * row_in_bytes + _TMP_SLABS * 128 * 4
    s_vmem_max = max(8, ((vmem_budget - (4 << 20)) // per_row) // 8 * 8)
    # No bigger than one per-core chunk of work.
    s_chunk = -(-s_full // num_par)
    s_chunk = max(8, -(-s_chunk // 8) * 8)

    s_tile = int(min(s_target, s_vmem_max, s_chunk))
    tiles = -(-s_full // (num_par * s_tile))     # reduction steps per parallel chunk
    s_total = num_par * tiles * s_tile           # padded row count
    return num_par, s_tile, tiles, s_total


def loss_forward(pred, target, w1, w2):
    """pred, target: [N, C, H, W] float arrays (f32 or bf16). Returns scalar f32 loss."""
    N, C, H, W = pred.shape
    HW = H * W
    itemsize = max(pred.dtype.itemsize, target.dtype.itemsize)

    vmem_budget = _vmem_budget_bytes()
    num_par, s_tile, tiles, s_total = _plan_tiles(HW, C, itemsize, vmem_budget)
    hw_pad = s_total * 128

    pf = pred.reshape(N, C, HW)
    tf = target.reshape(N, C, HW)
    if hw_pad != HW:
        # Zero padding contributes exactly 0 to prod/psum/tsum and to CE
        # (t = 0 there and lse stays finite).
        pad = ((0, 0), (0, 0), (0, hw_pad - HW))
        pf = jnp.pad(pf, pad)
        tf = jnp.pad(tf, pad)
    p4 = pf.reshape(N, C, s_total, 128)
    t4 = tf.reshape(N, C, s_total, 128)

    # Explicit VMEM limit: double-buffered input blocks + f32 temporaries + out.
    in_block_bytes = C * s_tile * 128 * itemsize
    need = (2 * 2 * in_block_bytes
            + _TMP_SLABS * s_tile * 128 * 4
            + 2 * 4 * 8 * 128 * 4)
    vmem_limit = int(min(vmem_budget, max(need + (2 << 20), 4 << 20)))

    cost = pl.CostEstimate(
        flops=10 * N * C * hw_pad,
        transcendentals=N * C * hw_pad + N * hw_pad,   # exp per element + log per position
        bytes_accessed=(p4.size * p4.dtype.itemsize
                        + t4.size * t4.dtype.itemsize
                        + num_par * N * 4 * 8 * 128 * 4),
    )

    in_spec = pl.BlockSpec((1, C, s_tile, 128),
                           lambda par, n, s: (n, 0, par * tiles + s, 0))
    out_spec = pl.BlockSpec((1, 1, 4, 8, 128),
                            lambda par, n, s: (par, n, 0, 0, 0))

    partials = pl.pallas_call(
        _loss_kernel,
        out_shape=jax.ShapeDtypeStruct((num_par, N, 4, 8, 128), jnp.float32),
        grid_spec=pltpu.PrefetchScalarGridSpec(
            num_scalar_prefetch=0,
            grid=(num_par, N, tiles),          # reduction (S-tile) axis last
            in_specs=[in_spec, in_spec],
            out_specs=out_spec,
        ),
        compiler_params=pltpu.CompilerParams(
            # par + N axes are independent -> megacore-shardable (2 TCs on v7x);
            # the S-tile axis carries the resident output accumulator.
            dimension_semantics=("parallel", "parallel", "arbitrary"),
            vmem_limit_bytes=vmem_limit,
        ),
        cost_estimate=cost,
    )(p4, t4)

    # Tiny final combine in f32 (per-sample scalars only).
    sums = jnp.sum(partials, axis=(0, 3, 4))     # (N, 4): inter, psum, tsum, ce
    inter, psum, tsum, ce = sums[:, 0], sums[:, 1], sums[:, 2], sums[:, 3]
    eps = jnp.float32(1e-5)
    dice = (2.0 * inter + eps) / (psum + tsum + eps)
    dice_loss = 1.0 - jnp.sum(dice) / jnp.float32(N)
    ce_loss = jnp.sum(ce) / jnp.float32(N * HW)  # normalize by ORIGINAL N*H*W
    return jnp.float32(w1) * dice_loss + jnp.float32(w2) * ce_loss


def _reference(pred, target, w1, w2):
    eps = 1e-5
    N = pred.shape[0]
    pf = pred.reshape(N, -1)
    tf = target.reshape(N, -1)
    dice = (2.0 * jnp.sum(pf * tf, axis=1) + eps) / (
        jnp.sum(pf, axis=1) + jnp.sum(tf, axis=1) + eps
    )
    dice_loss = 1.0 - jnp.sum(dice) / N
    logp = jax.nn.log_softmax(pred, axis=1)
    ce = -jnp.sum(target * logp, axis=1)  # (N, H, W)
    ce_loss = jnp.mean(ce)
    return w1 * dice_loss + w2 * ce_loss


if __name__ == "__main__":
    # Deterministic "parameters" of the Loss module.
    w1, w2 = 0.6, 0.4

    key = jax.random.PRNGKey(0)
    kp, kt = jax.random.split(key)

    N, C, H, W = 2, 4, 16, 16
    pred = jax.random.normal(kp, (N, C, H, W), dtype=jnp.float32)
    # Probability targets (same shape as pred), as required by both losses.
    target = jax.nn.softmax(
        jax.random.normal(kt, (N, C, H, W), dtype=jnp.float32), axis=1
    )

    loss = jax.block_until_ready(loss_forward(pred, target, w1, w2))
    ref = jax.block_until_ready(_reference(pred, target, w1, w2))

    assert jnp.allclose(loss, ref, rtol=1e-5, atol=1e-5), (loss, ref)
    print("KERNEL_OK")
</pallas_src>

<mosaic_0001>
module attributes {stable_mosaic.version = 11 : i64} {
  func.func @_loss_kernel(%arg0: i32, %arg1: i32, %arg2: i32, %arg3: memref<1x4x8x128xf32, #tpu.memory_space<vmem>>, %arg4: memref<1x4x8x128xf32, #tpu.memory_space<vmem>>, %arg5: memref<1x1x4x8x128xf32, #tpu.memory_space<vmem>>) attributes {dimension_semantics = [#tpu.dimension_semantics<parallel>, #tpu.dimension_semantics<parallel>, #tpu.dimension_semantics<arbitrary>], iteration_bounds = array<i64: 1, 2, 1>, scalar_prefetch = 0 : i64, scratch_operands = 0 : i64, tpu.core_type = #tpu.core_type<tc>, window_params = [{transform_indices = @transform_0, window_bounds = array<i64: 1, 4, 8, 128>}, {transform_indices = @transform_1, window_bounds = array<i64: 1, 4, 8, 128>}, {transform_indices = @transform_2, window_bounds = array<i64: 1, 1, 4, 8, 128>}]} {
    %c0_i32 = arith.constant 0 : i32
    %0 = arith.cmpi eq, %arg2, %c0_i32 : i32
    %1 = arith.extui %0 : i1 to i32
    %c0_i32_0 = arith.constant 0 : i32
    %2 = arith.cmpi ne, %1, %c0_i32_0 : i32
    scf.if %2 {
      %cst_88 = arith.constant 0.000000e+00 : f32
      %90 = vector.broadcast %cst_88 : f32 to vector<1x1x4x8x128xf32>
      %c0_89 = arith.constant 0 : index
      %c0_90 = arith.constant 0 : index
      %c0_91 = arith.constant 0 : index
      %c0_92 = arith.constant 0 : index
      %c0_93 = arith.constant 0 : index
      %91 = vector.load %arg5[%c0_89, %c0_90, %c0_91, %c0_92, %c0_93] : memref<1x1x4x8x128xf32, #tpu.memory_space<vmem>>, vector<1x1x4x8x128xf32>
      tpu.vector_store %arg5[%c0_89, %c0_90, %c0_91, %c0_92, %c0_93], %90 {strides = array<i32>} : memref<1x1x4x8x128xf32, #tpu.memory_space<vmem>>, vector<1x1x4x8x128xf32>,
    } else {
    }
    %c0 = arith.constant 0 : index
    %c0_1 = arith.constant 0 : index
    %c0_2 = arith.constant 0 : index
    %c0_3 = arith.constant 0 : index
    %3 = vector.load %arg3[%c0, %c0_1, %c0_2, %c0_3] : memref<1x4x8x128xf32, #tpu.memory_space<vmem>>, vector<1x1x8x128xf32>
    %4 = vector.shape_cast %3 : vector<1x1x8x128xf32> to vector<8x128xf32>
    %c0_4 = arith.constant 0 : index
    %c0_5 = arith.constant 0 : index
    %c0_6 = arith.constant 0 : index
    %c0_7 = arith.constant 0 : index
    %5 = vector.load %arg4[%c0_4, %c0_5, %c0_6, %c0_7] : memref<1x4x8x128xf32, #tpu.memory_space<vmem>>, vector<1x1x8x128xf32>
    %6 = vector.shape_cast %5 : vector<1x1x8x128xf32> to vector<8x128xf32>
    %7 = arith.mulf %4, %6 : vector<8x128xf32>
    %c0_8 = arith.constant 0 : index
    %c1 = arith.constant 1 : index
    %c0_9 = arith.constant 0 : index
    %c0_10 = arith.constant 0 : index
    %8 = vector.load %arg3[%c0_8, %c1, %c0_9, %c0_10] : memref<1x4x8x128xf32, #tpu.memory_space<vmem>>, vector<1x1x8x128xf32>
    %9 = vector.shape_cast %8 : vector<1x1x8x128xf32> to vector<8x128xf32>
    %c0_11 = arith.constant 0 : index
    %c1_12 = arith.constant 1 : index
    %c0_13 = arith.constant 0 : index
    %c0_14 = arith.constant 0 : index
    %10 = vector.load %arg4[%c0_11, %c1_12, %c0_13, %c0_14] : memref<1x4x8x128xf32, #tpu.memory_space<vmem>>, vector<1x1x8x128xf32>
    %11 = vector.shape_cast %10 : vector<1x1x8x128xf32> to vector<8x128xf32>
    %12 = arith.maximumf %4, %9 : vector<8x128xf32>
    %13 = arith.addf %4, %9 : vector<8x128xf32>
    %14 = arith.addf %6, %11 : vector<8x128xf32>
    %15 = arith.mulf %9, %11 : vector<8x128xf32>
    %16 = arith.addf %7, %15 : vector<8x128xf32>
    %c0_15 = arith.constant 0 : index
    %c2 = arith.constant 2 : index
    %c0_16 = arith.constant 0 : index
    %c0_17 = arith.constant 0 : index
    %17 = vector.load %arg3[%c0_15, %c2, %c0_16, %c0_17] : memref<1x4x8x128xf32, #tpu.memory_space<vmem>>, vector<1x1x8x128xf32>
    %18 = vector.shape_cast %17 : vector<1x1x8x128xf32> to vector<8x128xf32>
    %c0_18 = arith.constant 0 : index
    %c2_19 = arith.constant 2 : index
    %c0_20 = arith.constant 0 : index
    %c0_21 = arith.constant 0 : index
    %19 = vector.load %arg4[%c0_18, %c2_19, %c0_20, %c0_21] : memref<1x4x8x128xf32, #tpu.memory_space<vmem>>, vector<1x1x8x128xf32>
    %20 = vector.shape_cast %19 : vector<1x1x8x128xf32> to vector<8x128xf32>
    %21 = arith.maximumf %12, %18 : vector<8x128xf32>
    %22 = arith.addf %13, %18 : vector<8x128xf32>
    %23 = arith.addf %14, %20 : vector<8x128xf32>
    %24 = arith.mulf %18, %20 : vector<8x128xf32>
    %25 = arith.addf %16, %24 : vector<8x128xf32>
    %c0_22 = arith.constant 0 : index
    %c3 = arith.constant 3 : index
    %c0_23 = arith.constant 0 : index
    %c0_24 = arith.constant 0 : index
    %26 = vector.load %arg3[%c0_22, %c3, %c0_23, %c0_24] : memref<1x4x8x128xf32, #tpu.memory_space<vmem>>, vector<1x1x8x128xf32>
    %27 = vector.shape_cast %26 : vector<1x1x8x128xf32> to vector<8x128xf32>
    %c0_25 = arith.constant 0 : index
    %c3_26 = arith.constant 3 : index
    %c0_27 = arith.constant 0 : index
    %c0_28 = arith.constant 0 : index
    %28 = vector.load %arg4[%c0_25, %c3_26, %c0_27, %c0_28] : memref<1x4x8x128xf32, #tpu.memory_space<vmem>>, vector<1x1x8x128xf32>
    %29 = vector.shape_cast %28 : vector<1x1x8x128xf32> to vector<8x128xf32>
    %30 = arith.maximumf %21, %27 : vector<8x128xf32>
    %31 = arith.addf %22, %27 : vector<8x128xf32>
    %32 = arith.addf %23, %29 : vector<8x128xf32>
    %33 = arith.mulf %27, %29 : vector<8x128xf32>
    %34 = arith.addf %25, %33 : vector<8x128xf32>
    %c0_29 = arith.constant 0 : index
    %c0_30 = arith.constant 0 : index
    %c0_31 = arith.constant 0 : index
    %c0_32 = arith.constant 0 : index
    %35 = vector.load %arg3[%c0_29, %c0_30, %c0_31, %c0_32] : memref<1x4x8x128xf32, #tpu.memory_space<vmem>>, vector<1x1x8x128xf32>
    %36 = vector.shape_cast %35 : vector<1x1x8x128xf32> to vector<8x128xf32>
    %37 = arith.subf %36, %30 : vector<8x128xf32>
    %38 = math.exp %37 : vector<8x128xf32>
    %c0_33 = arith.constant 0 : index
    %c1_34 = arith.constant 1 : index
    %c0_35 = arith.constant 0 : index
    %c0_36 = arith.constant 0 : index
    %39 = vector.load %arg3[%c0_33, %c1_34, %c0_35, %c0_36] : memref<1x4x8x128xf32, #tpu.memory_space<vmem>>, vector<1x1x8x128xf32>
    %40 = vector.shape_cast %39 : vector<1x1x8x128xf32> to vector<8x128xf32>
    %41 = arith.subf %40, %30 : vector<8x128xf32>
    %42 = math.exp %41 : vector<8x128xf32>
    %43 = arith.addf %38, %42 : vector<8x128xf32>
    %c0_37 = arith.constant 0 : index
    %c2_38 = arith.constant 2 : index
    %c0_39 = arith.constant 0 : index
    %c0_40 = arith.constant 0 : index
    %44 = vector.load %arg3[%c0_37, %c2_38, %c0_39, %c0_40] : memref<1x4x8x128xf32, #tpu.memory_space<vmem>>, vector<1x1x8x128xf32>
    %45 = vector.shape_cast %44 : vector<1x1x8x128xf32> to vector<8x128xf32>
    %46 = arith.subf %45, %30 : vector<8x128xf32>
    %47 = math.exp %46 : vector<8x128xf32>
    %48 = arith.addf %43, %47 : vector<8x128xf32>
    %c0_41 = arith.constant 0 : index
    %c3_42 = arith.constant 3 : index
    %c0_43 = arith.constant 0 : index
    %c0_44 = arith.constant 0 : index
    %49 = vector.load %arg3[%c0_41, %c3_42, %c0_43, %c0_44] : memref<1x4x8x128xf32, #tpu.memory_space<vmem>>, vector<1x1x8x128xf32>
    %50 = vector.shape_cast %49 : vector<1x1x8x128xf32> to vector<8x128xf32>
    %51 = arith.subf %50, %30 : vector<8x128xf32>
    %52 = math.exp %51 : vector<8x128xf32>
    %53 = arith.addf %48, %52 : vector<8x128xf32>
    %54 = math.log %53 : vector<8x128xf32>
    %55 = arith.addf %54, %30 : vector<8x128xf32>
    %56 = arith.mulf %55, %32 : vector<8x128xf32>
    %57 = arith.subf %56, %34 : vector<8x128xf32>
    %c0_45 = arith.constant 0 : index
    %c0_46 = arith.constant 0 : index
    %c0_47 = arith.constant 0 : index
    %c0_48 = arith.constant 0 : index
    %c0_49 = arith.constant 0 : index
    %58 = vector.load %arg5[%c0_45, %c0_46, %c0_47, %c0_48, %c0_49] : memref<1x1x4x8x128xf32, #tpu.memory_space<vmem>>, vector<1x1x1x8x128xf32>
    %59 = vector.shape_cast %58 : vector<1x1x1x8x128xf32> to vector<8x128xf32>
    %60 = vector.shape_cast %34 : vector<8x128xf32> to vector<1x8x128xf32>
    %cst = arith.constant dense<0.000000e+00> : vector<8x128xf32>
    %61 = vector.multi_reduction <add>, %60, %cst [0] : vector<1x8x128xf32> to vector<8x128xf32>
    %62 = arith.addf %59, %61 : vector<8x128xf32>
    %c0_50 = arith.constant 0 : index
    %c0_51 = arith.constant 0 : index
    %c0_52 = arith.constant 0 : index
    %c0_53 = arith.constant 0 : index
    %c0_54 = arith.constant 0 : index
    %63 = vector.load %arg5[%c0_50, %c0_51, %c0_52, %c0_53, %c0_54] : memref<1x1x4x8x128xf32, #tpu.memory_space<vmem>>, vector<1x1x1x8x128xf32>
    %64 = vector.shape_cast %63 : vector<1x1x1x8x128xf32> to vector<8x128xf32>
    %65 = vector.shape_cast %62 : vector<8x128xf32> to vector<1x1x1x8x128xf32>
    tpu.vector_store %arg5[%c0_50, %c0_51, %c0_52, %c0_53, %c0_54], %65 {strides = array<i32>} : memref<1x1x4x8x128xf32, #tpu.memory_space<vmem>>, vector<1x1x1x8x128xf32>,
    %c0_55 = arith.constant 0 : index
    %c0_56 = arith.constant 0 : index
    %c1_57 = arith.constant 1 : index
    %c0_58 = arith.constant 0 : index
    %c0_59 = arith.constant 0 : index
    %66 = vector.load %arg5[%c0_55, %c0_56, %c1_57, %c0_58, %c0_59] : memref<1x1x4x8x128xf32, #tpu.memory_space<vmem>>, vector<1x1x1x8x128xf32>
    %67 = vector.shape_cast %66 : vector<1x1x1x8x128xf32> to vector<8x128xf32>
    %68 = vector.shape_cast %31 : vector<8x128xf32> to vector<1x8x128xf32>
    %cst_60 = arith.constant dense<0.000000e+00> : vector<8x128xf32>
    %69 = vector.multi_reduction <add>, %68, %cst_60 [0] : vector<1x8x128xf32> to vector<8x128xf32>
    %70 = arith.addf %67, %69 : vector<8x128xf32>
    %c0_61 = arith.constant 0 : index
    %c0_62 = arith.constant 0 : index
    %c1_63 = arith.constant 1 : index
    %c0_64 = arith.constant 0 : index
    %c0_65 = arith.constant 0 : index
    %71 = vector.load %arg5[%c0_61, %c0_62, %c1_63, %c0_64, %c0_65] : memref<1x1x4x8x128xf32, #tpu.memory_space<vmem>>, vector<1x1x1x8x128xf32>
    %72 = vector.shape_cast %71 : vector<1x1x1x8x128xf32> to vector<8x128xf32>
    %73 = vector.shape_cast %70 : vector<8x128xf32> to vector<1x1x1x8x128xf32>
    tpu.vector_store %arg5[%c0_61, %c0_62, %c1_63, %c0_64, %c0_65], %73 {strides = array<i32>} : memref<1x1x4x8x128xf32, #tpu.memory_space<vmem>>, vector<1x1x1x8x128xf32>,
    %c0_66 = arith.constant 0 : index
    %c0_67 = arith.constant 0 : index
    %c2_68 = arith.constant 2 : index
    %c0_69 = arith.constant 0 : index
    %c0_70 = arith.constant 0 : index
    %74 = vector.load %arg5[%c0_66, %c0_67, %c2_68, %c0_69, %c0_70] : memref<1x1x4x8x128xf32, #tpu.memory_space<vmem>>, vector<1x1x1x8x128xf32>
    %75 = vector.shape_cast %74 : vector<1x1x1x8x128xf32> to vector<8x128xf32>
    %76 = vector.shape_cast %32 : vector<8x128xf32> to vector<1x8x128xf32>
    %cst_71 = arith.constant dense<0.000000e+00> : vector<8x128xf32>
    %77 = vector.multi_reduction <add>, %76, %cst_71 [0] : vector<1x8x128xf32> to vector<8x128xf32>
    %78 = arith.addf %75, %77 : vector<8x128xf32>
    %c0_72 = arith.constant 0 : index
    %c0_73 = arith.constant 0 : index
    %c2_74 = arith.constant 2 : index
    %c0_75 = arith.constant 0 : index
    %c0_76 = arith.constant 0 : index
    %79 = vector.load %arg5[%c0_72, %c0_73, %c2_74, %c0_75, %c0_76] : memref<1x1x4x8x128xf32, #tpu.memory_space<vmem>>, vector<1x1x1x8x128xf32>
    %80 = vector.shape_cast %79 : vector<1x1x1x8x128xf32> to vector<8x128xf32>
    %81 = vector.shape_cast %78 : vector<8x128xf32> to vector<1x1x1x8x128xf32>
    tpu.vector_store %arg5[%c0_72, %c0_73, %c2_74, %c0_75, %c0_76], %81 {strides = array<i32>} : memref<1x1x4x8x128xf32, #tpu.memory_space<vmem>>, vector<1x1x1x8x128xf32>,
    %c0_77 = arith.constant 0 : index
    %c0_78 = arith.constant 0 : index
    %c3_79 = arith.constant 3 : index
    %c0_80 = arith.constant 0 : index
    %c0_81 = arith.constant 0 : index
    %82 = vector.load %arg5[%c0_77, %c0_78, %c3_79, %c0_80, %c0_81] : memref<1x1x4x8x128xf32, #tpu.memory_space<vmem>>, vector<1x1x1x8x128xf32>
    %83 = vector.shape_cast %82 : vector<1x1x1x8x128xf32> to vector<8x128xf32>
    %84 = vector.shape_cast %57 : vector<8x128xf32> to vector<1x8x128xf32>
    %cst_82 = arith.constant dense<0.000000e+00> : vector<8x128xf32>
    %85 = vector.multi_reduction <add>, %84, %cst_82 [0] : vector<1x8x128xf32> to vector<8x128xf32>
    %86 = arith.addf %83, %85 : vector<8x128xf32>
    %c0_83 = arith.constant 0 : index
    %c0_84 = arith.constant 0 : index
    %c3_85 = arith.constant 3 : index
    %c0_86 = arith.constant 0 : index
    %c0_87 = arith.constant 0 : index
    %87 = vector.load %arg5[%c0_83, %c0_84, %c3_85, %c0_86, %c0_87] : memref<1x1x4x8x128xf32, #tpu.memory_space<vmem>>, vector<1x1x1x8x128xf32>
    %88 = vector.shape_cast %87 : vector<1x1x1x8x128xf32> to vector<8x128xf32>
    %89 = vector.shape_cast %86 : vector<8x128xf32> to vector<1x1x1x8x128xf32>
    tpu.vector_store %arg5[%c0_83, %c0_84, %c3_85, %c0_86, %c0_87], %89 {strides = array<i32>} : memref<1x1x4x8x128xf32, #tpu.memory_space<vmem>>, vector<1x1x1x8x128xf32>,
    return
  }
  func.func @transform_0(%arg0: i32, %arg1: i32, %arg2: i32) -> (i32, i32, i32, i32) {
    %c1_i32 = arith.constant 1 : i32
    %0 = arith.muli %arg0, %c1_i32 : i32
    %1 = arith.addi %0, %arg2 : i32
    %c0_i32 = arith.constant 0 : i32
    %c0_i32_0 = arith.constant 0 : i32
    %c0_i32_1 = arith.constant 0 : i32
    return %arg1, %c0_i32, %1, %c0_i32_0 : i32, i32, i32, i32
  }
  func.func @transform_1(%arg0: i32, %arg1: i32, %arg2: i32) -> (i32, i32, i32, i32) {
    %c1_i32 = arith.constant 1 : i32
    %0 = arith.muli %arg0, %c1_i32 : i32
    %1 = arith.addi %0, %arg2 : i32
    %c0_i32 = arith.constant 0 : i32
    %c0_i32_0 = arith.constant 0 : i32
    %c0_i32_1 = arith.constant 0 : i32
    return %arg1, %c0_i32, %1, %c0_i32_0 : i32, i32, i32, i32
  }
  func.func @transform_2(%arg0: i32, %arg1: i32, %arg2: i32) -> (i32, i32, i32, i32, i32) {
    %c0_i32 = arith.constant 0 : i32
    %c0_i32_0 = arith.constant 0 : i32
    %c0_i32_1 = arith.constant 0 : i32
    %c0_i32_2 = arith.constant 0 : i32
    return %arg0, %arg1, %c0_i32, %c0_i32_0, %c0_i32_1 : i32, i32, i32, i32, i32
  }
}

</mosaic_0001>

<llo_original>
// kernel: tpu_custom_call.1
$region0: #{tpu_custom_call.1}
  #allocation0 [shape = 'u32[]', space=smem, size = 0x4, offset = 0x4, fixed_abs, tag = 'smem constant byte address 0x4 - core index']
  #allocation1 [shape = 'u32[144,128]{1,0:T(1,128)}', space=vmem, size = 0x12000, scoped, tag = 'internal scratch']
  %s0 = inlined_call_operand.hbm [shape: f32[2,4,8,128], index: 0, kind: input, shape index: {}]
  %s1 = inlined_call_operand.hbm [shape: f32[2,4,8,128], index: 1, kind: input, shape index: {}]
  %s2 = inlined_call_operand.hbm [shape: f32[1,2,4,8,128], index: 2, kind: output, shape index: {}]
  %s3 = sld [smem:[#allocation0]]
  $region53: #{tpu_custom_call.1} parent=0
    _
  %s5 = ssub.s32 1, %s3
  %s6 = scalar_select 0, %s5, %s3
  $region1: #{tpu_custom_call.1} parent=0
    #allocation2 [shape = 'u8[32768]{0}', space=vmem, size = 0x8000, scoped, tag = 'input window, operand 0']
    #allocation3 [shape = 's32[2]{0}', space=sflag, size = 0x8, scoped, tag = 'scoped memory for tpu_custom_call.1']
    #allocation4 [shape = 's32[2]{0}', space=sflag, size = 0x8, scoped, tag = 'scoped memory for tpu_custom_call.1']
    #allocation5 [shape = 'u8[32768]{0}', space=vmem, size = 0x8000, scoped, tag = 'input window, operand 1']
    #allocation6 [shape = 's32[2]{0}', space=sflag, size = 0x8, scoped, tag = 'scoped memory for tpu_custom_call.1']
    #allocation7 [shape = 'u8[32768]{0}', space=vmem, size = 0x8000, scoped, tag = 'output window, operand 0']
    %7 = vsyncpa [#allocation3], 0
    %s8 = scalar_lea.sflag [#allocation3], 1
    %9 = vsyncpa %s8, 0
    %10 = vsyncpa [#allocation6], 0
    %s11 = scalar_lea.sflag [#allocation6], 1
    %12 = vsyncpa %s11, 0
    %13 = vsyncpa [#allocation4], 0
    %s14 = scalar_lea.sflag [#allocation4], 1
    %15 = vsyncpa %s14, 0
    loop: start=0, step=1, limit=4
    $region2: #{tpu_custom_call.1} parent=1 // loop_pre_header
      _
    $region3: #{tpu_custom_call.1} parent=1 // loop_header
      %s17 = sphi 0, %s21
      %p18 = scmp.ge.s32.totalorder %s17, 4
      %s24 = sphi 0, %s43
      %s25 = sphi 0, %s39
      %s26 = sphi 0, %s35
      %s27 = sphi 0, %s24
      %s28 = sphi 0, %s25
      %s29 = sphi 0, %s26
      %s30 = sphi 0, %s27
      %s31 = sphi 0, %s28
      %s32 = sphi 0, %s29
      %s50 = sphi 0, %s52
      %s53 = sphi 0, %s50
      %s54 = sphi 0, %s53
      %s70 = sphi 0, %s54
      %s80 = sphi 0, %s82
      %s83 = sphi 0, %s80
      %s84 = sphi 0, %s83
      %s100 = sphi 0, %s84
      %s108 = sphi 0, %s110
      %s111 = sphi 0, %s108
      %s112 = sphi 0, %s111
      %s128 = sphi 0, %s112
    $region4: #{tpu_custom_call.1} parent=1 // loop_header_branch
      %20 = sbr.rel (%p18) target = $region8
    $region5: #{tpu_custom_call.1} parent=1 // loop_body
      %s22 = ssub.s32 %s17, 1
      %s23 = ssub.s32 %s17, 2
      %s33 = sadd.s32 1, %s26
      %p34 = scmp.ge.s32.totalorder %s33, 1
      %s35 = scalar_select %p34, 0, %s33
      %s36 = sadd.s32 1, %s25
      %s37 = scalar_select %p34, %s36, %s25
      %p38 = scmp.ge.s32.totalorder %s37, 2
      %s39 = scalar_select %p38, 0, %s37
      %s40 = sadd.s32 1, %s24
      %s41 = scalar_select %p38, %s40, %s24
      %p42 = scmp.ge.s32.totalorder %s41, 1
      %s43 = scalar_select %p42, 0, %s41
      %s44 = sadd.s32 %s24, %s26
      %s45 = sadd.s32 %s43, %s35
      %s46 = ssub.s32 %s25, %s39
      %s47 = ssub.s32 %s44, %s45
      %s48 = sor.u32 %s46, %s47
      %p49 = scmp.eq.s32.totalorder %s48, 0
      %s51 = sadd.s32 %s50, 1
      %s52 = scalar_select %p49, %s50, %s51
      %p55 = pneg %p49
      %p56 = scmp.eq.s32.totalorder %s17, 1
      %p57 = por %p55, %p56
      %p58 = scmp.ne.s32.totalorder %s50, %s53
      %p59 = scmp.eq.s32.totalorder %s17, 0
      %p60 = por %p58, %p59
      %p61 = scmp.ne.s32.totalorder %s50, %s53
      %p62 = scmp.eq.s32.totalorder %s22, 1
      %p63 = por %p61, %p62
      %p64 = scmp.ne.s32.totalorder %s53, %s54
      %p65 = scmp.eq.s32.totalorder %s22, 0
      %p66 = por %p64, %p65
      %p67 = scmp.ne.s32.totalorder %s53, %s54
      %p68 = scmp.eq.s32.totalorder %s23, 1
      %p69 = por %p67, %p68
      %p71 = scmp.ne.s32.totalorder %s54, %s70
      %p72 = scmp.eq.s32.totalorder %s23, 0
      %p73 = por %p71, %p72
      %s74 = sadd.s32 %s24, %s26
      %s75 = sadd.s32 %s43, %s35
      %s76 = ssub.s32 %s25, %s39
      %s77 = ssub.s32 %s74, %s75
      %s78 = sor.u32 %s76, %s77
      %p79 = scmp.eq.s32.totalorder %s78, 0
      %s81 = sadd.s32 %s80, 1
      %s82 = scalar_select %p79, %s80, %s81
      %p85 = pneg %p79
      %p86 = scmp.eq.s32.totalorder %s17, 1
      %p87 = por %p85, %p86
      %p88 = scmp.ne.s32.totalorder %s80, %s83
      %p89 = scmp.eq.s32.totalorder %s17, 0
      %p90 = por %p88, %p89
      %p91 = scmp.ne.s32.totalorder %s80, %s83
      %p92 = scmp.eq.s32.totalorder %s22, 1
      %p93 = por %p91, %p92
      %p94 = scmp.ne.s32.totalorder %s83, %s84
      %p95 = scmp.eq.s32.totalorder %s22, 0
      %p96 = por %p94, %p95
      %p97 = scmp.ne.s32.totalorder %s83, %s84
      %p98 = scmp.eq.s32.totalorder %s23, 1
      %p99 = por %p97, %p98
      %p101 = scmp.ne.s32.totalorder %s84, %s100
      %p102 = scmp.eq.s32.totalorder %s23, 0
      %p103 = por %p101, %p102
      %s104 = ssub.s32 %s24, %s43
      %s105 = ssub.s32 %s25, %s39
      %s106 = sor.u32 %s104, %s105
      %p107 = scmp.eq.s32.totalorder %s106, 0
      %s109 = sadd.s32 %s108, 1
      %s110 = scalar_select %p107, %s108, %s109
      %p113 = pneg %p107
      %p114 = scmp.eq.s32.totalorder %s17, 1
      %p115 = por %p113, %p114
      %p116 = scmp.ne.s32.totalorder %s108, %s111
      %p117 = scmp.eq.s32.totalorder %s17, 0
      %p118 = por %p116, %p117
      %p119 = scmp.ne.s32.totalorder %s108, %s111
      %p120 = scmp.eq.s32.totalorder %s22, 1
      %p121 = por %p119, %p120
      %p122 = scmp.ne.s32.totalorder %s111, %s112
      %p123 = scmp.eq.s32.totalorder %s22, 0
      %p124 = por %p122, %p123
      %p125 = scmp.ne.s32.totalorder %s111, %s112
      %p126 = scmp.eq.s32.totalorder %s23, 1
      %p127 = por %p125, %p126
      %p129 = scmp.ne.s32.totalorder %s112, %s128
      %p130 = scmp.eq.s32.totalorder %s23, 0
      %p131 = por %p129, %p130
      %p132 = scmp.le.s32.totalorder 1, %s17
      %p133 = scmp.lt.s32.totalorder %s17, 3
      %p134 = pnand %p132, %p133
      %p135 = pneg %p134
      // Predicated region
      $region9: #{tpu_custom_call.1} parent=5 // pred_check
        _
      $region10: #{tpu_custom_call.1} parent=5 // pred_check_branch
        %137 = sbr.rel (%p134) target = $region12
      $region11: #{tpu_custom_call.1} parent=5 // pred_region
        %s138 = ssub.s32 %s17, 1
      $region12: #{tpu_custom_call.1} parent=5 // pred_fallthru
        _
      %p139 = scmp.lt.s32.totalorder %s17, 2
      // Predicated region
      $region13: #{tpu_custom_call.1} parent=5 // pred_check
        %p140 = pneg %p139
      $region14: #{tpu_custom_call.1} parent=5 // pred_check_branch
        %142 = sbr.rel (%p140) target = $region16
      $region15: #{tpu_custom_call.1} parent=5 // pred_region
        // Predicated region
        $region17: #{tpu_custom_call.1} parent=15 // pred_check
          %p143 = pneg %p60
        $region18: #{tpu_custom_call.1} parent=15 // pred_check_branch
          %145 = sbr.rel (%p143) target = $region20
        $region19: #{tpu_custom_call.1} parent=15 // pred_region
          %s146 = sand.u32 %s50, 1
          %s147 = scalar_lea.sflag [#allocation3], %s146
          %s148 = sand.u32 %s50, 1
          %s149 = smul.addr %s148, 32
          %s150 = scalar_lea.vmem [#allocation2], %s149
          %s151 = sadd.s32 %s24, %s26
          %s153 = ssub.s32 512, 512
          %154 = vsyncadd %s147, %s153
          %s155 = smul.addr %s25, 4
          %s156 = sadd.s32 %s151, %s155
          %s157 = smul.addr %s156, 128
          %s158 = scalar_lea.hbm %s0, %s157
          %s159 = sshll.u32 %s150, 4
          %s160 = int_to_ptr.vmem [resolvable:$true] %s159
          %165 = dma.hbm_to_vmem [thread:$0]  %s158, 512, %s160, %s147, 128, 128, 8
        $region20: #{tpu_custom_call.1} parent=15 // pred_fallthru
          _
        // Predicated region
        $region21: #{tpu_custom_call.1} parent=15 // pred_check
          %p166 = pneg %p90
        $region22: #{tpu_custom_call.1} parent=15 // pred_check_branch
          %168 = sbr.rel (%p166) target = $region24
        $region23: #{tpu_custom_call.1} parent=15 // pred_region
          %s169 = sand.u32 %s80, 1
          %s170 = scalar_lea.sflag [#allocation6], %s169
          %s171 = sand.u32 %s80, 1
          %s172 = smul.addr %s171, 32
          %s173 = scalar_lea.vmem [#allocation5], %s172
          %s174 = sadd.s32 %s24, %s26
          %s176 = ssub.s32 512, 512
          %177 = vsyncadd %s170, %s176
          %s178 = smul.addr %s25, 4
          %s179 = sadd.s32 %s174, %s178
          %s180 = smul.addr %s179, 128
          %s181 = scalar_lea.hbm %s1, %s180
          %s182 = sshll.u32 %s173, 4
          %s183 = int_to_ptr.vmem [resolvable:$true] %s182
          %188 = dma.hbm_to_vmem [thread:$0]  %s181, 512, %s183, %s170, 128, 128, 8
        $region24: #{tpu_custom_call.1} parent=15 // pred_fallthru
          _
      $region16: #{tpu_custom_call.1} parent=5 // pred_fallthru
        _
      %p189 = scmp.le.s32.totalorder 1, %s17
      %p190 = scmp.lt.s32.totalorder %s17, 3
      %p191 = pnand %p189, %p190
      %p192 = pneg %p191
      // Predicated region
      $region25: #{tpu_custom_call.1} parent=5 // pred_check
        _
      $region26: #{tpu_custom_call.1} parent=5 // pred_check_branch
        %194 = sbr.rel (%p191) target = $region28
      $region27: #{tpu_custom_call.1} parent=5 // pred_region
        %s195 = ssub.s32 %s17, 1
        %s196 = sand.u32 %s53, 1
        %s197 = scalar_lea.sflag [#allocation3], %s196
        %s198 = sand.u32 %s53, 1
        %s199 = smul.addr %s198, 32
        %s200 = scalar_lea.vmem [#allocation2], %s199
        // Predicated region
        $region29: #{tpu_custom_call.1} parent=27 // pred_check
          %p201 = pneg %p66
        $region30: #{tpu_custom_call.1} parent=27 // pred_check_branch
          %203 = sbr.rel (%p201) target = $region32
        $region31: #{tpu_custom_call.1} parent=27 // pred_region
          %204 = dma.done %s197, 512
        $region32: #{tpu_custom_call.1} parent=27 // pred_fallthru
          _
        %s205 = sand.u32 %s83, 1
        %s206 = scalar_lea.sflag [#allocation6], %s205
        %s207 = sand.u32 %s83, 1
        %s208 = smul.addr %s207, 32
        %s209 = scalar_lea.vmem [#allocation5], %s208
        // Predicated region
        $region33: #{tpu_custom_call.1} parent=27 // pred_check
          %p210 = pneg %p96
        $region34: #{tpu_custom_call.1} parent=27 // pred_check_branch
          %212 = sbr.rel (%p210) target = $region36
        $region35: #{tpu_custom_call.1} parent=27 // pred_region
          %213 = dma.done %s206, 512
        $region36: #{tpu_custom_call.1} parent=27 // pred_fallthru
          _
        %s214 = sand.u32 %s53, 1
        %s215 = scalar_lea.sflag [#allocation3], %s214
        %s216 = sand.u32 %s53, 1
        %s217 = smul.addr %s216, 32
        %s218 = scalar_lea.vmem [#allocation2], %s217
        %p219 = pneg %p66
        %p220 = pneg %p63
        %s221 = sand.u32 %s83, 1
        %s222 = scalar_lea.sflag [#allocation6], %s221
        %s223 = sand.u32 %s83, 1
        %s224 = smul.addr %s223, 32
        %s225 = scalar_lea.vmem [#allocation5], %s224
        %p226 = pneg %p96
        %p227 = pneg %p93
        %p228 = pneg %p124
        %p229 = pneg %p121
        %s230 = sand.u32 %s111, 1
        %s231 = scalar_lea.sflag [#allocation4], %s230
        %s232 = sand.u32 %s111, 1
        %s233 = smul.addr %s232, 32
        %s234 = scalar_lea.vmem [#allocation7], %s233
        %s235 = sadd.s32 %s27, %s29
        %s236 = sadd.s32 %s27, %s29
        %p237 = scmp.eq.s32.totalorder %s29, 0
        // Predicated region
        $region37: #{tpu_custom_call.1} parent=27 // pred_check
          %p238 = pneg %p237
        $region38: #{tpu_custom_call.1} parent=27 // pred_check_branch
          %240 = sbr.rel (%p238) target = $region40
        $region39: #{tpu_custom_call.1} parent=27 // pred_region
          %241 = vst [vmem:[%s234] sm:$0xff] 0.0
          %242 = vst [vmem:[%s234 + $0x8] sm:$0xff] 0.0
          %243 = vst [vmem:[%s234 + $0x10] sm:$0xff] 0.0
          %244 = vst [vmem:[%s234 + $0x18] sm:$0xff] 0.0
        $region40: #{tpu_custom_call.1} parent=27 // pred_fallthru
          _
        %v245 = vld [vmem:[%s200] sm:$0xff]
        %v246 = vld [vmem:[%s209] sm:$0xff]
        %v247 = vmul.f32 %v245, %v246
        %s248 = scalar_lea.vmem %s200, 8 [#allocation2]
        %v249 = vld [vmem:[%s248] sm:$0xff]
        %s250 = scalar_lea.vmem %s209, 8 [#allocation5]
        %v251 = vld [vmem:[%s250] sm:$0xff]
        %v252 = vmax.f32 %v245, %v249
        %v253 = vadd.f32 %v245, %v249
        %v254 = vadd.f32 %v246, %v251
        %v255 = vmul.f32 %v249, %v251
        %v256 = vadd.f32 %v247, %v255
        %s257 = scalar_lea.vmem %s200, 16 [#allocation2]
        %v258 = vld [vmem:[%s257] sm:$0xff]
        %s259 = scalar_lea.vmem %s209, 16 [#allocation5]
        %v260 = vld [vmem:[%s259] sm:$0xff]
        %v261 = vmax.f32 %v252, %v258
        %v262 = vadd.f32 %v253, %v258
        %v263 = vadd.f32 %v254, %v260
        %v264 = vmul.f32 %v258, %v260
        %v265 = vadd.f32 %v256, %v264
        %s266 = scalar_lea.vmem %s200, 24 [#allocation2]
        %v267 = vld [vmem:[%s266] sm:$0xff]
        %s268 = scalar_lea.vmem %s209, 24 [#allocation5]
        %v269 = vld [vmem:[%s268] sm:$0xff]
        %v270 = vmax.f32 %v261, %v267
        %v271 = vadd.f32 %v262, %v267
        %v272 = vadd.f32 %v263, %v269
        %v273 = vmul.f32 %v267, %v269
        %v274 = vadd.f32 %v265, %v273
        %v275 = vsub.f32 %v245, %v270
        %v276 = vmul.f32 %v275, 1.442695
        %v277 = vpow.pop %v276
        %v278 = vsub.f32 %v249, %v270
        %v279 = vmul.f32 %v278, 1.442695
        %v280 = vpow.pop %v279
        %v281 = vadd.f32 %v277, %v280
        %v282 = vsub.f32 %v258, %v270
        %v283 = vmul.f32 %v282, 1.442695
        %v284 = vpow.pop %v283
        %v285 = vadd.f32 %v281, %v284
        %v286 = vsub.f32 %v267, %v270
        %v287 = vmul.f32 %v286, 1.442695
        %v288 = vpow.pop %v287
        %v289 = vadd.f32 %v285, %v288
        %v290 = vlog2.pop %v289
        %v291 = vmul.f32 %v290, 0.6931472
        %v292 = vadd.f32 %v291, %v270
        %v293 = vmul.f32 %v292, %v272
        %v294 = vsub.f32 %v293, %v274
        %v295 = vld [vmem:[%s234] sm:$0xff]
        %v296 = vadd.f32 %v274, 0.0
        %v297 = vadd.f32 %v295, %v296
        %298 = vst [vmem:[%s234] sm:$0xff] %v297
        %s299 = scalar_lea.vmem %s234, 8 [#allocation7]
        %v300 = vld [vmem:[%s299] sm:$0xff]
        %v301 = vadd.f32 %v271, 0.0
        %v302 = vadd.f32 %v300, %v301
        %303 = vst [vmem:[%s299] sm:$0xff] %v302
        %s304 = scalar_lea.vmem %s234, 16 [#allocation7]
        %v305 = vld [vmem:[%s304] sm:$0xff]
        %v306 = vadd.f32 %v272, 0.0
        %v307 = vadd.f32 %v305, %v306
        %308 = vst [vmem:[%s304] sm:$0xff] %v307
        %s309 = scalar_lea.vmem %s234, 24 [#allocation7]
        %v310 = vld [vmem:[%s309] sm:$0xff]
        %v311 = vadd.f32 %v294, 0.0
        %v312 = vadd.f32 %v310, %v311
        %313 = vst [vmem:[%s309] sm:$0xff] %v312
        %s314 = sand.u32 %s111, 1
        %s315 = scalar_lea.sflag [#allocation4], %s314
        %s316 = sand.u32 %s111, 1
        %s317 = smul.addr %s316, 32
        %s318 = scalar_lea.vmem [#allocation7], %s317
        // Predicated region
        $region41: #{tpu_custom_call.1} parent=27 // pred_check
          %p319 = pneg %p121
        $region42: #{tpu_custom_call.1} parent=27 // pred_check_branch
          %321 = sbr.rel (%p319) target = $region44
        $region43: #{tpu_custom_call.1} parent=27 // pred_region
          %s323 = ssub.s32 512, 512
          %324 = vsyncadd %s315, %s323
          %s325 = smul.addr %s28, 4
          %s326 = smul.addr %s27, 8
          %s327 = sadd.s32 %s325, %s326
          %s328 = smul.addr %s327, 128
          %s329 = scalar_lea.hbm %s2, %s328
          %s330 = sshll.u32 %s318, 4
          %s331 = int_to_ptr.vmem [resolvable:$true] %s330
          %336 = dma.vmem_to_hbm [thread:$0]  %s331, 512, %s329, %s315, 128, 128, 8
        $region44: #{tpu_custom_call.1} parent=27 // pred_fallthru
          _
      $region28: #{tpu_custom_call.1} parent=5 // pred_fallthru
        _
      %p337 = scmp.le.s32.totalorder 2, %s17
      // Predicated region
      $region45: #{tpu_custom_call.1} parent=5 // pred_check
        %p338 = pneg %p337
      $region46: #{tpu_custom_call.1} parent=5 // pred_check_branch
        %340 = sbr.rel (%p338) target = $region48
      $region47: #{tpu_custom_call.1} parent=5 // pred_region
        %s341 = ssub.s32 %s17, 2
        // Predicated region
        $region49: #{tpu_custom_call.1} parent=47 // pred_check
          %p342 = pneg %p127
        $region50: #{tpu_custom_call.1} parent=47 // pred_check_branch
          %344 = sbr.rel (%p342) target = $region52
        $region51: #{tpu_custom_call.1} parent=47 // pred_region
          %s345 = sand.u32 %s112, 1
          %s346 = scalar_lea.sflag [#allocation4], %s345
          %s347 = sand.u32 %s112, 1
          %s348 = smul.addr %s347, 32
          %s349 = scalar_lea.vmem [#allocation7], %s348
          %350 = dma.done %s346, 512
        $region52: #{tpu_custom_call.1} parent=47 // pred_fallthru
          _
      $region48: #{tpu_custom_call.1} parent=5 // pred_fallthru
        _
    $region6: #{tpu_custom_call.1} parent=1 // loop_footer
      %s21 = sadd.s32 1, %s17
    $region7: #{tpu_custom_call.1} parent=1 // loop_footer_branch
      %16 = sbr.rel target = $region3
    $region8: #{tpu_custom_call.1} parent=1 // loop_exit
      _
    %351 = vsyncpa [#allocation3], 1
    %s352 = scalar_lea.sflag [#allocation3], 1
    %353 = vsyncpa %s352, 1
    %354 = vsyncpa [#allocation6], 1
    %s355 = scalar_lea.sflag [#allocation6], 1
    %356 = vsyncpa %s355, 1
    %357 = vsyncpa [#allocation4], 1
    %s358 = scalar_lea.sflag [#allocation4], 1
    %359 = vsyncpa %s358, 1

</llo_original>
